<compile_context>
chip_gen: v7x
topology: tpu7x:2x2x1
jax: 0.10.0
libtpu: 0.0.40
codegen_flags: <defaults>
</compile_context>

<pallas_src>
import functools

import jax
import jax.numpy as jnp
from jax.experimental import pallas as pl
from jax.experimental.pallas import tpu as pltpu

BN_EPS = 1e-5
NEG_SLOPE = 0.1


def _round_up(a, b):
    return (a + b - 1) // b * b


# ---------------------------------------------------------------------------
# Pass 1: phase-packed deconv matmul + fused partial BN statistics.
# ---------------------------------------------------------------------------
def conv_stats_kernel(p_ref, w_ref, f_ref, s_ref):
    """p_ref: (TILE, 4*Cin) bf16 patches; w_ref: (4*Cin, C4p) bf16 packed weights.

    f_ref: (TILE, C4p) f32 phase-packed conv output.
    s_ref: (1, 8, C4p) f32 partial stats; row 0 = sum, row 1 = sum of squares.
    """
    acc = jnp.dot(p_ref[...], w_ref[...], preferred_element_type=jnp.float32)
    f_ref[...] = acc
    ssum = jnp.sum(acc, axis=0, keepdims=True)            # (1, C4p)
    ssq = jnp.sum(acc * acc, axis=0, keepdims=True)       # (1, C4p)
    zero = jnp.zeros((6, acc.shape[1]), jnp.float32)
    s_ref[0] = jnp.concatenate([ssum, ssq, zero], axis=0)


# ---------------------------------------------------------------------------
# Pass 2: folded BN scale/shift + LeakyReLU + skip add (elementwise, lane dense).
# ---------------------------------------------------------------------------
def bn_act_add_kernel(f_ref, y_ref, a_ref, c_ref, o_ref):
    g = f_ref[...] * a_ref[...] + c_ref[...]
    g = jnp.where(g >= 0, g, NEG_SLOPE * g)
    o_ref[...] = (g + y_ref[...]).astype(o_ref.dtype)


def upsample_forward(x_nchw, y_nchw, w_t, b, gamma, beta):
    """x_nchw: (N, Cin, H, W), y_nchw: (N, Cout, Hy, Wy) (PyTorch NCHW convention).

    `b` (conv bias) is accepted for interface parity but not applied: a per-channel
    constant before training-mode BatchNorm is exactly cancelled by the mean subtraction
    and does not change the variance.
    """
    del b
    N, Cin, H, W = x_nchw.shape
    _, Cout, Hy, Wy = y_nchw.shape

    # output_padding inferred from output_size=y.size(), as PyTorch does.
    op_h = Hy - ((H - 1) * 2 - 2 + 3)
    op_w = Wy - ((W - 1) * 2 - 2 + 3)
    assert op_h in (0, 1) and op_w in (0, 1), "y size not reachable by this deconv"

    K = 4 * Cin                       # packed contraction (4 taps x Cin)
    C4 = 4 * Cout                     # packed output (4 phases x Cout)
    C4p = _round_up(C4, 128)          # lane-dense channel dim
    pix = N * H * W
    TILE = min(512, _round_up(pix, 8))
    pix_p = _round_up(pix, TILE)
    grid1 = pix_p // TILE

    # ---- glue: NCHW -> NHWC, build the 4-tap patch matrix (im2col for the 4 phases) ----
    x_nhwc = jnp.transpose(x_nchw, (0, 2, 3, 1))
    xpad = jnp.pad(x_nhwc, ((0, 0), (0, 1), (0, 1), (0, 0)))      # pad bottom/right by 1
    taps = [xpad[:, :H, :W, :],        # tap0 = x[i,   j  ]
            xpad[:, :H, 1:, :],        # tap1 = x[i,   j+1]
            xpad[:, 1:, :W, :],        # tap2 = x[i+1, j  ]
            xpad[:, 1:, 1:, :]]        # tap3 = x[i+1, j+1]
    patches = jnp.concatenate(taps, axis=-1).reshape(pix, K).astype(jnp.bfloat16)
    patches = jnp.pad(patches, ((0, pix_p - pix), (0, 0)))        # zero rows: no-op for stats

    # ---- packed weights: (tap, Cin, phase, Cout).  Phases: (ph, pw) -> ph*2 + pw. ----
    # Derivation (ConvTranspose2d, k=3, s=2, p=1):
    #   out[2i  , 2j  ] = x[i,j]  .w[1,1]
    #   out[2i  , 2j+1] = x[i,j]  .w[1,2] + x[i,j+1].w[1,0]
    #   out[2i+1, 2j  ] = x[i,j]  .w[2,1] + x[i+1,j].w[0,1]
    #   out[2i+1, 2j+1] = x[i,j].w[2,2] + x[i,j+1].w[2,0] + x[i+1,j].w[0,2] + x[i+1,j+1].w[0,0]
    # Using the flipped kernel wflip[kh,kw] = w[2-kh, 2-kw] this is the table below.
    wflip = w_t[:, :, ::-1, ::-1]
    tap_phase_to_k = {
        (0, 0): (1, 1),
        (0, 1): (1, 0), (1, 1): (1, 2),
        (0, 2): (0, 1), (2, 2): (2, 1),
        (0, 3): (0, 0), (1, 3): (0, 2), (2, 3): (2, 0), (3, 3): (2, 2),
    }
    wp = jnp.zeros((4, Cin, 4, Cout), w_t.dtype)
    for (tap, phase), (kh, kw) in tap_phase_to_k.items():
        wp = wp.at[tap, :, phase, :].set(wflip[:, :, kh, kw])
    w_packed = jnp.pad(wp.reshape(K, C4), ((0, 0), (0, C4p - C4))).astype(jnp.bfloat16)

    # ---- pass 1: conv + partial stats (gridded, pipelined, parallel) ----
    f_phase, stats = pl.pallas_call(
        conv_stats_kernel,
        grid=(grid1,),
        in_specs=[
            pl.BlockSpec((TILE, K), lambda i: (i, 0)),
            pl.BlockSpec((K, C4p), lambda i: (0, 0)),
        ],
        out_specs=[
            pl.BlockSpec((TILE, C4p), lambda i: (i, 0)),
            pl.BlockSpec((1, 8, C4p), lambda i: (i, 0, 0)),
        ],
        out_shape=[
            jax.ShapeDtypeStruct((pix_p, C4p), jnp.float32),
            jax.ShapeDtypeStruct((grid1, 8, C4p), jnp.float32),
        ],
        compiler_params=pltpu.CompilerParams(dimension_semantics=("parallel",)),
    )(patches, w_packed)

    # ---- tiny stats combine (XLA): fold BN into per-channel scale/shift ----
    sum_c = stats[:, 0, :C4].sum(axis=0).reshape(4, Cout).sum(axis=0)
    ssq_c = stats[:, 1, :C4].sum(axis=0).reshape(4, Cout).sum(axis=0)
    if op_h == 0 or op_w == 0:
        # Exclude the phase rows/cols that fall outside the requested output size.
        f6 = f_phase[:pix, :C4].reshape(N, H, W, 2, 2, Cout)

        def strip_sums(strip):
            s = strip.reshape(-1, Cout)
            return s.sum(axis=0), (s * s).sum(axis=0)

        if op_h == 0:
            s, q = strip_sums(f6[:, H - 1, :, 1, :, :])
            sum_c, ssq_c = sum_c - s, ssq_c - q
        if op_w == 0:
            s, q = strip_sums(f6[:, :, W - 1, :, 1, :])
            sum_c, ssq_c = sum_c - s, ssq_c - q
        if op_h == 0 and op_w == 0:
            s, q = strip_sums(f6[:, H - 1, W - 1, 1, 1, :])
            sum_c, ssq_c = sum_c + s, ssq_c + q      # corner was subtracted twice

    count = N * Hy * Wy
    mean = sum_c / count
    var = jnp.maximum(ssq_c / count - mean * mean, 0.0)   # biased (training-mode) variance
    scale = gamma * jax.lax.rsqrt(var + BN_EPS)
    shift = beta - mean * scale
    scale_p = jnp.pad(jnp.tile(scale, 4), (0, C4p - C4)).reshape(1, C4p)
    shift_p = jnp.pad(jnp.tile(shift, 4), (0, C4p - C4)).reshape(1, C4p)

    # ---- bring the skip tensor into the same phase-packed layout ----
    y_pad = jnp.pad(y_nchw, ((0, 0), (0, 0), (0, 2 * H - Hy), (0, 2 * W - Wy)))
    y6 = y_pad.reshape(N, Cout, H, 2, W, 2)
    y_phase = jnp.transpose(y6, (0, 2, 4, 3, 5, 1)).reshape(pix, C4)
    y_phase = jnp.pad(y_phase, ((0, pix_p - pix), (0, C4p - C4)))

    # ---- pass 2: normalize + LeakyReLU + skip add (gridded, parallel) ----
    out_phase = pl.pallas_call(
        bn_act_add_kernel,
        grid=(grid1,),
        in_specs=[
            pl.BlockSpec((TILE, C4p), lambda i: (i, 0)),
            pl.BlockSpec((TILE, C4p), lambda i: (i, 0)),
            pl.BlockSpec((1, C4p), lambda i: (0, 0)),
            pl.BlockSpec((1, C4p), lambda i: (0, 0)),
        ],
        out_specs=pl.BlockSpec((TILE, C4p), lambda i: (i, 0)),
        out_shape=jax.ShapeDtypeStruct((pix_p, C4p), jnp.float32),
        compiler_params=pltpu.CompilerParams(dimension_semantics=("parallel",)),
    )(f_phase, y_phase, scale_p, shift_p)

    # ---- glue back: phase layout -> NCHW, crop to the requested output size ----
    out6 = out_phase[:pix, :C4].reshape(N, H, W, 2, 2, Cout)
    out_full = jnp.transpose(out6, (0, 5, 1, 3, 2, 4)).reshape(N, Cout, 2 * H, 2 * W)
    return out_full[:, :, :Hy, :Wy]


def reference_forward(x_nchw, y_nchw, w_t, b, gamma, beta, conv_dtype=jnp.float32):
    """Pure-JAX reference of the PyTorch forward (training-mode batchnorm).

    conv_dtype=jnp.bfloat16 mirrors the kernel's mixed-precision MXU path (f32 accum).
    """
    N, Cin, H, W = x_nchw.shape
    _, Cout, Hy, Wy = y_nchw.shape
    op_h = Hy - ((H - 1) * 2 - 2 + 3)
    op_w = Wy - ((W - 1) * 2 - 2 + 3)
    x_nhwc = jnp.transpose(x_nchw, (0, 2, 3, 1)).astype(conv_dtype)
    wf = jnp.transpose(w_t[:, :, ::-1, ::-1], (2, 3, 0, 1)).astype(conv_dtype)  # HWIO
    f = jax.lax.conv_general_dilated(
        x_nhwc, wf, window_strides=(1, 1),
        padding=((1, 1 + op_h), (1, 1 + op_w)),
        lhs_dilation=(2, 2),
        dimension_numbers=("NHWC", "HWIO", "NHWC"),
        preferred_element_type=jnp.float32)
    f = f + b
    mean = f.mean(axis=(0, 1, 2))
    var = ((f - mean) ** 2).mean(axis=(0, 1, 2))
    f = (f - mean) * jax.lax.rsqrt(var + BN_EPS) * gamma + beta
    f = jnp.where(f >= 0, f, NEG_SLOPE * f)
    f = f + jnp.transpose(y_nchw, (0, 2, 3, 1))
    return jnp.transpose(f, (0, 3, 1, 2))


if __name__ == "__main__":
    N, Cin, Cout, H, W = 2, 8, 16, 8, 8
    Hy, Wy = 2 * H, 2 * W

    key = jax.random.PRNGKey(0)
    kx, ky, kwt, kb = jax.random.split(key, 4)

    x = jax.random.normal(kx, (N, Cin, H, W), jnp.float32)      # NCHW, like PyTorch
    y = jax.random.normal(ky, (N, Cout, Hy, Wy), jnp.float32)   # NCHW skip connection

    # Deterministic parameter init (ConvTranspose2d weight is (Cin, Cout, kH, kW)).
    bound = 1.0 / (Cin * 3 * 3) ** 0.5
    w_t = jax.random.uniform(kwt, (Cin, Cout, 3, 3), jnp.float32, -bound, bound)
    b = jax.random.uniform(kb, (Cout,), jnp.float32, -bound, bound)
    gamma = jnp.ones((Cout,), jnp.float32)   # BatchNorm2d default init
    beta = jnp.zeros((Cout,), jnp.float32)

    out = jax.block_until_ready(jax.jit(upsample_forward)(x, y, w_t, b, gamma, beta))

    # Tight check vs. a reference that uses the same bf16-input / f32-accum conv path.
    ref_mixed = jax.block_until_ready(
        jax.jit(functools.partial(reference_forward, conv_dtype=jnp.bfloat16))(
            x, y, w_t, b, gamma, beta))
    # Looser sanity check vs. the full-f32 (PyTorch-faithful) math.
    ref_f32 = jax.block_until_ready(
        jax.jit(reference_forward)(x, y, w_t, b, gamma, beta))

    assert out.shape == y.shape and out.dtype == jnp.float32
    err_mixed = float(jnp.max(jnp.abs(out - ref_mixed)))
    assert jnp.allclose(out, ref_mixed, atol=2e-3, rtol=2e-3), err_mixed
    err_f32 = float(jnp.max(jnp.abs(out - ref_f32)))
    assert jnp.allclose(out, ref_f32, atol=1e-1, rtol=1e-1), err_f32
    print("KERNEL_OK")
</pallas_src>

<mosaic_0001>
module attributes {stable_mosaic.version = 11 : i64} {
  func.func @conv_stats_kernel(%arg0: i32, %arg1: memref<128x32xbf16, #tpu.memory_space<vmem>>, %arg2: memref<32x128xbf16, #tpu.memory_space<vmem>>, %arg3: memref<128x128xf32, #tpu.memory_space<vmem>>, %arg4: memref<1x8x128xf32, #tpu.memory_space<vmem>>) attributes {dimension_semantics = [#tpu.dimension_semantics<parallel>], iteration_bounds = array<i64: 1>, scalar_prefetch = 0 : i64, scratch_operands = 0 : i64, tpu.core_type = #tpu.core_type<tc>, window_params = [{transform_indices = @transform_0, window_bounds = array<i64: 128, 32>}, {pipeline_mode = #tpu.pipeline_mode<synchronous>, transform_indices = @transform_1, window_bounds = array<i64: 32, 128>}, {transform_indices = @transform_2, window_bounds = array<i64: 128, 128>}, {transform_indices = @transform_3, window_bounds = array<i64: 1, 8, 128>}]} {
    %c0 = arith.constant 0 : index
    %c0_0 = arith.constant 0 : index
    %0 = vector.load %arg1[%c0, %c0_0] : memref<128x32xbf16, #tpu.memory_space<vmem>>, vector<128x32xbf16>
    %c0_1 = arith.constant 0 : index
    %c0_2 = arith.constant 0 : index
    %1 = vector.load %arg2[%c0_1, %c0_2] : memref<32x128xbf16, #tpu.memory_space<vmem>>, vector<32x128xbf16>
    %cst = arith.constant dense<0.000000e+00> : vector<128x128xf32>
    %2 = tpu.matmul %0, %1, %cst {dimension_numbers = #tpu.dot_dimension_numbers<[1], [0], [0], [1], [0, 0, 1, 1], [], []>} : vector<128x32xbf16>, vector<32x128xbf16>, vector<128x128xf32> -> vector<128x128xf32>
    %c0_3 = arith.constant 0 : index
    %c0_4 = arith.constant 0 : index
    %3 = vector.load %arg3[%c0_3, %c0_4] : memref<128x128xf32, #tpu.memory_space<vmem>>, vector<128x128xf32>
    tpu.vector_store %arg3[%c0_3, %c0_4], %2 {strides = array<i32>} : memref<128x128xf32, #tpu.memory_space<vmem>>, vector<128x128xf32>,
    %cst_5 = arith.constant dense<0.000000e+00> : vector<128xf32>
    %4 = vector.multi_reduction <add>, %2, %cst_5 [0] : vector<128x128xf32> to vector<128xf32>
    %5 = vector.shape_cast %4 : vector<128xf32> to vector<1x128xf32>
    %6 = arith.mulf %2, %2 : vector<128x128xf32>
    %cst_6 = arith.constant dense<0.000000e+00> : vector<128xf32>
    %7 = vector.multi_reduction <add>, %6, %cst_6 [0] : vector<128x128xf32> to vector<128xf32>
    %8 = vector.shape_cast %7 : vector<128xf32> to vector<1x128xf32>
    %cst_7 = arith.constant 0.000000e+00 : f32
    %9 = vector.broadcast %cst_7 : f32 to vector<6x128xf32>
    %10 = tpu.concatenate %5, %8, %9 in 0 : vector<1x128xf32>, vector<1x128xf32>, vector<6x128xf32> -> vector<8x128xf32>
    %c0_8 = arith.constant 0 : index
    %c0_9 = arith.constant 0 : index
    %c0_10 = arith.constant 0 : index
    %11 = vector.load %arg4[%c0_8, %c0_9, %c0_10] : memref<1x8x128xf32, #tpu.memory_space<vmem>>, vector<1x8x128xf32>
    %12 = vector.shape_cast %11 : vector<1x8x128xf32> to vector<8x128xf32>
    %13 = vector.shape_cast %10 : vector<8x128xf32> to vector<1x8x128xf32>
    tpu.vector_store %arg4[%c0_8, %c0_9, %c0_10], %13 {strides = array<i32>} : memref<1x8x128xf32, #tpu.memory_space<vmem>>, vector<1x8x128xf32>,
    return
  }
  func.func @transform_0(%arg0: i32) -> (i32, i32) {
    %c0_i32 = arith.constant 0 : i32
    %c0_i32_0 = arith.constant 0 : i32
    return %arg0, %c0_i32 : i32, i32
  }
  func.func @transform_1(%arg0: i32) -> (i32, i32) {
    %c0_i32 = arith.constant 0 : i32
    %c0_i32_0 = arith.constant 0 : i32
    %c0_i32_1 = arith.constant 0 : i32
    return %c0_i32, %c0_i32_0 : i32, i32
  }
  func.func @transform_2(%arg0: i32) -> (i32, i32) {
    %c0_i32 = arith.constant 0 : i32
    %c0_i32_0 = arith.constant 0 : i32
    return %arg0, %c0_i32 : i32, i32
  }
  func.func @transform_3(%arg0: i32) -> (i32, i32, i32) {
    %c0_i32 = arith.constant 0 : i32
    %c0_i32_0 = arith.constant 0 : i32
    %c0_i32_1 = arith.constant 0 : i32
    return %arg0, %c0_i32, %c0_i32_0 : i32, i32, i32
  }
}

module attributes {stable_mosaic.version = 11 : i64} {
  func.func @bn_act_add_kernel(%arg0: i32, %arg1: memref<128x128xf32, #tpu.memory_space<vmem>>, %arg2: memref<128x128xf32, #tpu.memory_space<vmem>>, %arg3: memref<1x128xf32, #tpu.memory_space<vmem>>, %arg4: memref<1x128xf32, #tpu.memory_space<vmem>>, %arg5: memref<128x128xf32, #tpu.memory_space<vmem>>) attributes {dimension_semantics = [#tpu.dimension_semantics<parallel>], iteration_bounds = array<i64: 1>, scalar_prefetch = 0 : i64, scratch_operands = 0 : i64, tpu.core_type = #tpu.core_type<tc>, window_params = [{transform_indices = @transform_0, window_bounds = array<i64: 128, 128>}, {transform_indices = @transform_1, window_bounds = array<i64: 128, 128>}, {pipeline_mode = #tpu.pipeline_mode<synchronous>, transform_indices = @transform_2, window_bounds = array<i64: 1, 128>}, {pipeline_mode = #tpu.pipeline_mode<synchronous>, transform_indices = @transform_3, window_bounds = array<i64: 1, 128>}, {transform_indices = @transform_4, window_bounds = array<i64: 128, 128>}]} {
    %c0 = arith.constant 0 : index
    %c0_0 = arith.constant 0 : index
    %0 = vector.load %arg1[%c0, %c0_0] : memref<128x128xf32, #tpu.memory_space<vmem>>, vector<128x128xf32>
    %c0_1 = arith.constant 0 : index
    %c0_2 = arith.constant 0 : index
    %1 = vector.load %arg3[%c0_1, %c0_2] : memref<1x128xf32, #tpu.memory_space<vmem>>, vector<1x128xf32>
    %2 = vector.broadcast %1 : vector<1x128xf32> to vector<128x128xf32>
    %3 = arith.mulf %0, %2 : vector<128x128xf32>
    %c0_3 = arith.constant 0 : index
    %c0_4 = arith.constant 0 : index
    %4 = vector.load %arg4[%c0_3, %c0_4] : memref<1x128xf32, #tpu.memory_space<vmem>>, vector<1x128xf32>
    %5 = vector.broadcast %4 : vector<1x128xf32> to vector<128x128xf32>
    %6 = arith.addf %3, %5 : vector<128x128xf32>
    %cst = arith.constant 0.000000e+00 : f32
    %7 = vector.broadcast %cst : f32 to vector<128x128xf32>
    %8 = arith.cmpf oge, %6, %7 : vector<128x128xf32>
    %cst_5 = arith.constant 1.000000e-01 : f32
    %9 = vector.broadcast %cst_5 : f32 to vector<128x128xf32>
    %10 = arith.mulf %9, %6 : vector<128x128xf32>
    %11 = arith.select %8, %6, %10 : vector<128x128xi1>, vector<128x128xf32>
    %c0_6 = arith.constant 0 : index
    %c0_7 = arith.constant 0 : index
    %12 = vector.load %arg2[%c0_6, %c0_7] : memref<128x128xf32, #tpu.memory_space<vmem>>, vector<128x128xf32>
    %13 = arith.addf %11, %12 : vector<128x128xf32>
    %c0_8 = arith.constant 0 : index
    %c0_9 = arith.constant 0 : index
    %14 = vector.load %arg5[%c0_8, %c0_9] : memref<128x128xf32, #tpu.memory_space<vmem>>, vector<128x128xf32>
    tpu.vector_store %arg5[%c0_8, %c0_9], %13 {strides = array<i32>} : memref<128x128xf32, #tpu.memory_space<vmem>>, vector<128x128xf32>,
    return
  }
  func.func @transform_0(%arg0: i32) -> (i32, i32) {
    %c0_i32 = arith.constant 0 : i32
    %c0_i32_0 = arith.constant 0 : i32
    return %arg0, %c0_i32 : i32, i32
  }
  func.func @transform_1(%arg0: i32) -> (i32, i32) {
    %c0_i32 = arith.constant 0 : i32
    %c0_i32_0 = arith.constant 0 : i32
    return %arg0, %c0_i32 : i32, i32
  }
  func.func @transform_2(%arg0: i32) -> (i32, i32) {
    %c0_i32 = arith.constant 0 : i32
    %c0_i32_0 = arith.constant 0 : i32
    %c0_i32_1 = arith.constant 0 : i32
    return %c0_i32, %c0_i32_0 : i32, i32
  }
  func.func @transform_3(%arg0: i32) -> (i32, i32) {
    %c0_i32 = arith.constant 0 : i32
    %c0_i32_0 = arith.constant 0 : i32
    %c0_i32_1 = arith.constant 0 : i32
    return %c0_i32, %c0_i32_0 : i32, i32
  }
  func.func @transform_4(%arg0: i32) -> (i32, i32) {
    %c0_i32 = arith.constant 0 : i32
    %c0_i32_0 = arith.constant 0 : i32
    return %arg0, %c0_i32 : i32, i32
  }
}

</mosaic_0001>

<llo_original>
// kernel: tile.18
$region0: #{tile.18}
  #allocation0 [shape = 's32[1]{0}', space=sflag, size = 0x4, scoped, tag = 'scoped memory for tile.18']
  %s0 = inlined_call_operand.vmem [shape: f32[16], index: 0, kind: input, shape index: {}]
  %s1 = inlined_call_operand.vmem [shape: f32[4,16], index: 1, kind: output, shape index: {}]
  // Predicated region
  $region2: #{tile.18} parent=0 // pred_check
    _
  $region3: #{tile.18} parent=0 // pred_check_branch
    %3 = sbr.rel (0) target = $region5
  $region4: #{tile.18} parent=0 // pred_region
    _
  $region5: #{tile.18} parent=0 // pred_fallthru
    _
  %v4 = vld [vmem:[%s0] ss:$0 sm:$0xff]
  %5 = vst [vmem:[%s1] sm:$0xf] %v4

// kernel: tile.19
$region0: #{tile.19}
  %s0 = inlined_call_operand.vmem [shape: f32[4,16], index: 0, kind: input, shape index: {}]
  %s1 = inlined_call_operand.vmem [shape: f32[64], index: 1, kind: output, shape index: {}]
  $region1: #{tile.19} parent=0
    #allocation0 [shape = 'u8[4096]{0}', space=vmem, size = 0x1000, scoped, tag = 'scoped mem for output reshape']
    #allocation1 [shape = 'u8[4096]{0}', space=vmem, size = 0x1000, scoped, tag = 'scoped mem for input reshape']
    %s3 = sshllo.u32 0, 4
    %v4 = vld [vmem:[%s0] sm:%s3]
    %5 = vst [vmem:[#allocation1] sm:%s3] %v4
    %v6 = vld [vmem:[#allocation1] sm:$0x1]
    %vm7 = vcmask 130048
    %8 = vst.msk [vmem:[#allocation0] sm:$0x1] %vm7, %v6
    %s9 = scalar_lea.vmem [#allocation1], 3
    %v10 = vld [vmem:[%s9] sm:$0x1]
    %11 = vrot.lane.b32.xlu0 %v10, 48
    %v12 = vpop.permute.xlu0 %11
    %vm13 = vcmask 523648
    %14 = vst.msk [vmem:[#allocation0] sm:$0x1] %vm13, %v12
    %s15 = scalar_lea.vmem [#allocation1], 2
    %v16 = vld [vmem:[%s15] sm:$0x1]
    %17 = vrot.lane.b32.xlu0 %v16, 32
    %v18 = vpop.permute.xlu0 %17
    %vm19 = vcmask 392448
    %20 = vst.msk [vmem:[#allocation0] sm:$0x1] %vm19, %v18
    %s21 = scalar_lea.vmem [#allocation1], 1
    %v22 = vld [vmem:[%s21] sm:$0x1]
    %23 = vrot.lane.b32.xlu0 %v22, 16
    %v24 = vpop.permute.xlu0 %23
    %vm25 = vcmask 261248
    %26 = vst.msk [vmem:[#allocation0] sm:$0x1] %vm25, %v24
    %s28 = sshllo.u32 0, 1
    %v30 = vld [vmem:[#allocation0] sm:%s28]
    %s31 = sshllo.u32 0, 1
    %32 = vst [vmem:[%s1] sm:%s31] %v30

// kernel: upsample_forward.2
$region0: #{upsample_forward.2}
  #allocation0 [shape = 'u32[]', space=smem, size = 0x4, offset = 0x4, fixed_abs, tag = 'smem constant byte address 0x4 - core index']
  #allocation1 [shape = 'u32[144,128]{1,0:T(1,128)}', space=vmem, size = 0x12000, scoped, tag = 'internal scratch']
  %s0 = inlined_call_operand.vmem [shape: bf16[128,32], index: 0, kind: input, shape index: {}]
  %s1 = inlined_call_operand.vmem [shape: bf16[32,128], index: 1, kind: input, shape index: {}]
  %s2 = inlined_call_operand.vmem [shape: f32[128,128], index: 2, kind: output, shape index: {0}]
  %s3 = inlined_call_operand.vmem [shape: f32[1,8,128], index: 3, kind: output, shape index: {1}]
  %4 = xla_tuple %s2, %s3
  %s5 = sld [smem:[#allocation0]]
  $region26: #{upsample_forward.2} parent=0
    _
  %s7 = ssub.s32 1, %s5
  %s8 = scalar_select 0, %s7, %s5
  // Predicated region
  $region2: #{upsample_forward.2} parent=0 // pred_check
    _
  $region3: #{upsample_forward.2} parent=0 // pred_check_branch
    %10 = sbr.rel (0) target = $region5
  $region4: #{upsample_forward.2} parent=0 // pred_region
    _
  $region5: #{upsample_forward.2} parent=0 // pred_fallthru
    _
  // Predicated region
  $region6: #{upsample_forward.2} parent=0 // pred_check
    _
  $region7: #{upsample_forward.2} parent=0 // pred_check_branch
    %12 = sbr.rel (0) target = $region9
  $region8: #{upsample_forward.2} parent=0 // pred_region
    _
  $region9: #{upsample_forward.2} parent=0 // pred_fallthru
    _
  %v14 = vld [vmem:[%s0] sm:$0xf]
  %v15 = vld [vmem:[%s0 + $0x4] sm:$0xf]
  %v16 = vld [vmem:[%s0 + $0x8] sm:$0xf]
  %v17 = vld [vmem:[%s0 + $0xc] sm:$0xf]
  %v18 = vld [vmem:[%s0 + $0x10] sm:$0xf]
  %v19 = vld [vmem:[%s0 + $0x14] sm:$0xf]
  %v20 = vld [vmem:[%s0 + $0x18] sm:$0xf]
  %v21 = vld [vmem:[%s0 + $0x1c] sm:$0xf]
  %v22 = vld [vmem:[%s0 + $0x20] sm:$0xf]
  %v23 = vld [vmem:[%s0 + $0x24] sm:$0xf]
  %v24 = vld [vmem:[%s0 + $0x28] sm:$0xf]
  %v25 = vld [vmem:[%s0 + $0x2c] sm:$0xf]
  %v26 = vld [vmem:[%s0 + $0x30] sm:$0xf]
  %v27 = vld [vmem:[%s0 + $0x34] sm:$0xf]
  %v28 = vld [vmem:[%s0 + $0x38] sm:$0xf]
  %v29 = vld [vmem:[%s0 + $0x3c] sm:$0xf]
  %v30 = vld [vmem:[%s1] sm:$0xf]
  %v31 = vld [vmem:[%s1 + $0x4] sm:$0xf]
  %v32 = vld [vmem:[%s1 + $0x8] sm:$0xf]
  %v33 = vld [vmem:[%s1 + $0xc] sm:$0xf]
  %v50 = vunpack.c.l.b16 %v14
  %v51 = vunpack.c.l.b16 %v15
  %v52 = vunpack.c.l.b16 %v16
  %v53 = vunpack.c.l.b16 %v17
  %v54 = vunpack.c.l.b16 %v18
  %v55 = vunpack.c.l.b16 %v19
  %v56 = vunpack.c.l.b16 %v20
  %v57 = vunpack.c.l.b16 %v21
  %v58 = vunpack.c.l.b16 %v22
  %v59 = vunpack.c.l.b16 %v23
  %v60 = vunpack.c.l.b16 %v24
  %v61 = vunpack.c.l.b16 %v25
  %v62 = vunpack.c.l.b16 %v26
  %v63 = vunpack.c.l.b16 %v27
  %v64 = vunpack.c.l.b16 %v28
  %v65 = vunpack.c.l.b16 %v29
  %v66 = vpack.c.b16 %v51, %v50
  %v67 = vpack.c.b16 %v53, %v52
  %v68 = vpack.c.b16 %v55, %v54
  %v69 = vpack.c.b16 %v57, %v56
  %v70 = vpack.c.b16 %v59, %v58
  %v71 = vpack.c.b16 %v61, %v60
  %v72 = vpack.c.b16 %v63, %v62
  %v73 = vpack.c.b16 %v65, %v64
  %v78 = vunpack.c.l.b16 %v30
  %v79 = vunpack.c.l.b16 %v31
  %v80 = vunpack.c.l.b16 %v32
  %v81 = vunpack.c.l.b16 %v33
  %v82 = vpack.c.b16 %v79, %v78
  %v83 = vpack.c.b16 %v81, %v80
  %vm86 = vcmask 261120
  %v88 = vsel %vm86, %v66, 0
  %v91 = vsel %vm86, %v67, 0
  %v94 = vsel %vm86, %v68, 0
  %v97 = vsel %vm86, %v69, 0
  %v100 = vsel %vm86, %v70, 0
  %v103 = vsel %vm86, %v71, 0
  %v106 = vsel %vm86, %v72, 0
  %v109 = vsel %vm86, %v73, 0
  %111 = vmatprep.subr.bf16.mxu0 0
  %112 = vmatpush1.bf16.msra.mxu0 %v82
  %113 = vmatprep.subr.bf16.mxu0 0
  %114 = vmatpush1.bf16.msra.mxu0 %v83
  %115 = vmatprep.subr.bf16.mxu0 0
  %116 = vmatpush1.bf16.msra.mxu0 0
  %117 = vmatprep.subr.bf16.mxu0 0
  %118 = vmatpush1.bf16.msra.mxu0 0
  %119 = vmatprep.subr.bf16.mxu0 0
  %120 = vmatpush1.bf16.msra.mxu0 0
  %121 = vmatprep.subr.bf16.mxu0 0
  %122 = vmatpush1.bf16.msra.mxu0 0
  %123 = vmatprep.subr.bf16.mxu0 0
  %124 = vmatpush1.bf16.msra.mxu0 0
  %125 = vmatprep.subr.bf16.mxu0 0
  %126 = vmatpush1.bf16.msra.mxu0 0
  %127 = vmatprep.subr.bf16.mxu0 0
  %128 = vmatpush1.bf16.msra.mxu0 0
  %129 = vmatprep.subr.bf16.mxu0 0
  %130 = vmatpush1.bf16.msra.mxu0 0
  %131 = vmatprep.subr.bf16.mxu0 0
  %132 = vmatpush1.bf16.msra.mxu0 0
  %133 = vmatprep.subr.bf16.mxu0 0
  %134 = vmatpush1.bf16.msra.mxu0 0
  %135 = vmatprep.subr.bf16.mxu0 0
  %136 = vmatpush1.bf16.msra.mxu0 0
  %137 = vmatprep.subr.bf16.mxu0 0
  %138 = vmatpush1.bf16.msra.mxu0 0
  %139 = vmatprep.subr.bf16.mxu0 0
  %140 = vmatpush1.bf16.msra.mxu0 0
  %141 = vmatprep.subr.bf16.mxu0 0
  %142 = vmatpush1.bf16.msra.mxu0 0
  %143 = vmatprep.mubr.bf16.mxu0 0
  %144 = vmatmul.mubr.bf16.gmra.mrb[0].mxu0 %v88
  %v145 = vpop.f32.mrb[0].mxu0
  %v146 = vadd.f32 0.0, %v145
  %v147 = vpop.f32.mrb[0].mxu0
  %v148 = vpop.f32.mrb[0].mxu0
  %v149 = vadd.f32 0.0, %v148
  %v150 = vpop.f32.mrb[0].mxu0
  %151 = vmatprep.mubr.bf16.mxu0 0
  %152 = vmatmul.mubr.bf16.gmra.mrb[0].mxu0 %v91
  %v153 = vpop.f32.mrb[0].mxu0
  %v154 = vadd.f32 0.0, %v153
  %v155 = vpop.f32.mrb[0].mxu0
  %v156 = vpop.f32.mrb[0].mxu0
  %v157 = vadd.f32 0.0, %v156
  %v158 = vpop.f32.mrb[0].mxu0
  %159 = vmatprep.mubr.bf16.mxu0 0
  %160 = vmatmul.mubr.bf16.gmra.mrb[0].mxu0 %v94
  %v161 = vpop.f32.mrb[0].mxu0
  %v162 = vadd.f32 0.0, %v161
  %v163 = vpop.f32.mrb[0].mxu0
  %v164 = vpop.f32.mrb[0].mxu0
  %v165 = vadd.f32 0.0, %v164
  %v166 = vpop.f32.mrb[0].mxu0
  %167 = vmatprep.mubr.bf16.mxu0 0
  %168 = vmatmul.mubr.bf16.gmra.mrb[0].mxu0 %v97
  %v169 = vpop.f32.mrb[0].mxu0
  %v170 = vadd.f32 0.0, %v169
  %v171 = vpop.f32.mrb[0].mxu0
  %v172 = vpop.f32.mrb[0].mxu0
  %v173 = vadd.f32 0.0, %v172
  %v174 = vpop.f32.mrb[0].mxu0
  %175 = vmatprep.mubr.bf16.mxu0 0
  %176 = vmatmul.mubr.bf16.gmra.mrb[0].mxu0 %v100
  %v177 = vpop.f32.mrb[0].mxu0
  %v178 = vadd.f32 0.0, %v177
  %v179 = vpop.f32.mrb[0].mxu0
  %v180 = vpop.f32.mrb[0].mxu0
  %v181 = vadd.f32 0.0, %v180
  %v182 = vpop.f32.mrb[0].mxu0
  %183 = vmatprep.mubr.bf16.mxu0 0
  %184 = vmatmul.mubr.bf16.gmra.mrb[0].mxu0 %v103
  %v185 = vpop.f32.mrb[0].mxu0
  %v186 = vadd.f32 0.0, %v185
  %v187 = vpop.f32.mrb[0].mxu0
  %v188 = vpop.f32.mrb[0].mxu0
  %v189 = vadd.f32 0.0, %v188
  %v190 = vpop.f32.mrb[0].mxu0
  %191 = vmatprep.mubr.bf16.mxu0 0
  %192 = vmatmul.mubr.bf16.gmra.mrb[0].mxu0 %v106
  %v193 = vpop.f32.mrb[0].mxu0
  %v194 = vadd.f32 0.0, %v193
  %v195 = vpop.f32.mrb[0].mxu0
  %v196 = vpop.f32.mrb[0].mxu0
  %v197 = vadd.f32 0.0, %v196
  %v198 = vpop.f32.mrb[0].mxu0
  %199 = vmatprep.mubr.bf16.mxu0 0
  %200 = vmatmul.mubr.bf16.gmra.mrb[0].mxu0 %v109
  %v201 = vpop.f32.mrb[0].mxu0
  %v202 = vadd.f32 0.0, %v201
  %v203 = vpop.f32.mrb[0].mxu0
  %v204 = vpop.f32.mrb[0].mxu0
  %v205 = vadd.f32 0.0, %v204
  %v206 = vpop.f32.mrb[0].mxu0
  %207 = vdwg.mxu0
  %208 = vst [vmem:[%s2] sm:$0xff] %v146
  %209 = vst [vmem:[%s2 + $0x8] sm:$0xff] %v149
  %210 = vst [vmem:[%s2 + $0x10] sm:$0xff] %v154
  %211 = vst [vmem:[%s2 + $0x18] sm:$0xff] %v157
  %212 = vst [vmem:[%s2 + $0x20] sm:$0xff] %v162
  %213 = vst [vmem:[%s2 + $0x28] sm:$0xff] %v165
  %214 = vst [vmem:[%s2 + $0x30] sm:$0xff] %v170
  %215 = vst [vmem:[%s2 + $0x38] sm:$0xff] %v173
  %216 = vst [vmem:[%s2 + $0x40] sm:$0xff] %v178
  %217 = vst [vmem:[%s2 + $0x48] sm:$0xff] %v181
  %218 = vst [vmem:[%s2 + $0x50] sm:$0xff] %v186
  %219 = vst [vmem:[%s2 + $0x58] sm:$0xff] %v189
  %220 = vst [vmem:[%s2 + $0x60] sm:$0xff] %v194
  %221 = vst [vmem:[%s2 + $0x68] sm:$0xff] %v197
  %222 = vst [vmem:[%s2 + $0x70] sm:$0xff] %v202
  %223 = vst [vmem:[%s2 + $0x78] sm:$0xff] %v205
  %v224 = vadd.f32 %v146, %v149
  %v225 = vadd.f32 %v224, %v154
  %v226 = vadd.f32 %v225, %v157
  %v227 = vadd.f32 %v226, %v162
  %v228 = vadd.f32 %v227, %v165
  %v229 = vadd.f32 %v228, %v170
  %v230 = vadd.f32 %v229, %v173
  %v231 = vadd.f32 %v230, %v178
  %v232 = vadd.f32 %v231, %v181
  %v233 = vadd.f32 %v232, %v186
  %v234 = vadd.f32 %v233, %v189
  %v235 = vadd.f32 %v234, %v194
  %v236 = vadd.f32 %v235, %v197
  %v237 = vadd.f32 %v236, %v202
  %v238 = vadd.f32 %v237, %v205
  %v239 = vrot.slane %v238, 4
  %v240 = vadd.f32 %v238, %v239
  %v241 = vrot.slane %v240, 2
  %v242 = vadd.f32 %v240, %v241
  %v243 = vrot.slane %v242, 1
  %v244 = vadd.f32 %v242, %v243
  %v245 = vmul.f32 %v146, %v146
  %v246 = vmul.f32 %v149, %v149
  %v247 = vmul.f32 %v154, %v154
  %v248 = vmul.f32 %v157, %v157
  %v249 = vmul.f32 %v162, %v162
  %v250 = vmul.f32 %v165, %v165
  %v251 = vmul.f32 %v170, %v170
  %v252 = vmul.f32 %v173, %v173
  %v253 = vmul.f32 %v178, %v178
  %v254 = vmul.f32 %v181, %v181
  %v255 = vmul.f32 %v186, %v186
  %v256 = vmul.f32 %v189, %v189
  %v257 = vmul.f32 %v194, %v194
  %v258 = vmul.f32 %v197, %v197
  %v259 = vmul.f32 %v202, %v202
  %v260 = vmul.f32 %v205, %v205
  %v261 = vadd.f32 %v245, %v246
  %v262 = vadd.f32 %v261, %v247
  %v263 = vadd.f32 %v262, %v248
  %v264 = vadd.f32 %v263, %v249
  %v265 = vadd.f32 %v264, %v250
  %v266 = vadd.f32 %v265, %v251
  %v267 = vadd.f32 %v266, %v252
  %v268 = vadd.f32 %v267, %v253
  %v269 = vadd.f32 %v268, %v254
  %v270 = vadd.f32 %v269, %v255
  %v271 = vadd.f32 %v270, %v256
  %v272 = vadd.f32 %v271, %v257
  %v273 = vadd.f32 %v272, %v258
  %v274 = vadd.f32 %v273, %v259
  %v275 = vadd.f32 %v274, %v260
  %v276 = vrot.slane %v275, 4
  %v277 = vadd.f32 %v275, %v276
  %v278 = vrot.slane %v277, 2
  %v279 = vadd.f32 %v277, %v278
  %v280 = vrot.slane %v279, 1
  %v281 = vadd.f32 %v279, %v280
  %vm282 = vcmask 1040384
  %v283 = vsel %vm282, %v244, %v281
  %vm284 = vcmask 1041408
  %v285 = vsel %vm284, %v283, 0.0
  %286 = vst [vmem:[%s3] sm:$0xff] %v285
  // Predicated region
  $region10: #{upsample_forward.2} parent=0 // pred_check
    _
  $region11: #{upsample_forward.2} parent=0 // pred_check_branch
    %288 = sbr.rel (0) target = $region13
  $region12: #{upsample_forward.2} parent=0 // pred_region
    _
  $region13: #{upsample_forward.2} parent=0 // pred_fallthru
    _
  // Predicated region
  $region14: #{upsample_forward.2} parent=0 // pred_check
    _
  $region15: #{upsample_forward.2} parent=0 // pred_check_branch
    %290 = sbr.rel (0) target = $region17
  $region16: #{upsample_forward.2} parent=0 // pred_region
    _
  $region17: #{upsample_forward.2} parent=0 // pred_fallthru
    _
  // Predicated region
  $region18: #{upsample_forward.2} parent=0 // pred_check
    _
  $region19: #{upsample_forward.2} parent=0 // pred_check_branch
    %292 = sbr.rel (0) target = $region21
  $region20: #{upsample_forward.2} parent=0 // pred_region
    _
  $region21: #{upsample_forward.2} parent=0 // pred_fallthru
    _
  // Predicated region
  $region22: #{upsample_forward.2} parent=0 // pred_check
    _
  $region23: #{upsample_forward.2} parent=0 // pred_check_branch
    %294 = sbr.rel (0) target = $region25
  $region24: #{upsample_forward.2} parent=0 // pred_region
    _
  $region25: #{upsample_forward.2} parent=0 // pred_fallthru
    _

// kernel: upsample_forward.3
$region0: #{upsample_forward.3}
  #allocation0 [shape = 'u32[]', space=smem, size = 0x4, offset = 0x4, fixed_abs, tag = 'smem constant byte address 0x4 - core index']
  #allocation1 [shape = 'u32[144,128]{1,0:T(1,128)}', space=vmem, size = 0x12000, scoped, tag = 'internal scratch']
  %s0 = inlined_call_operand.vmem [shape: f32[128,128], index: 0, kind: input, shape index: {}]
  %s1 = inlined_call_operand.vmem [shape: f32[128,128], index: 1, kind: input, shape index: {}]
  %s2 = inlined_call_operand.vmem [shape: f32[1,128], index: 2, kind: input, shape index: {}]
  %s3 = inlined_call_operand.vmem [shape: f32[1,128], index: 3, kind: input, shape index: {}]
  %s4 = inlined_call_operand.vmem [shape: f32[128,128], index: 4, kind: output, shape index: {}]
  %s5 = sld [smem:[#allocation0]]
  $region26: #{upsample_forward.3} parent=0
    _
  %s7 = ssub.s32 1, %s5
  %s8 = scalar_select 0, %s7, %s5
  // Predicated region
  $region2: #{upsample_forward.3} parent=0 // pred_check
    _
  $region3: #{upsample_forward.3} parent=0 // pred_check_branch
    %10 = sbr.rel (0) target = $region5
  $region4: #{upsample_forward.3} parent=0 // pred_region
    _
  $region5: #{upsample_forward.3} parent=0 // pred_fallthru
    _
  // Predicated region
  $region6: #{upsample_forward.3} parent=0 // pred_check
    _
  $region7: #{upsample_forward.3} parent=0 // pred_check_branch
    %12 = sbr.rel (0) target = $region9
  $region8: #{upsample_forward.3} parent=0 // pred_region
    _
  $region9: #{upsample_forward.3} parent=0 // pred_fallthru
    _
  // Predicated region
  $region10: #{upsample_forward.3} parent=0 // pred_check
    _
  $region11: #{upsample_forward.3} parent=0 // pred_check_branch
    %14 = sbr.rel (0) target = $region13
  $region12: #{upsample_forward.3} parent=0 // pred_region
    _
  $region13: #{upsample_forward.3} parent=0 // pred_fallthru
    _
  // Predicated region
  $region14: #{upsample_forward.3} parent=0 // pred_check
    _
  $region15: #{upsample_forward.3} parent=0 // pred_check_branch
    %16 = sbr.rel (0) target = $region17
  $region16: #{upsample_forward.3} parent=0 // pred_region
    _
  $region17: #{upsample_forward.3} parent=0 // pred_fallthru
    _
  %v17 = vld [vmem:[%s0] sm:$0xff]
  %v18 = vld [vmem:[%s0 + $0x8] sm:$0xff]
  %v19 = vld [vmem:[%s0 + $0x10] sm:$0xff]
  %v20 = vld [vmem:[%s0 + $0x18] sm:$0xff]
  %v21 = vld [vmem:[%s0 + $0x20] sm:$0xff]
  %v22 = vld [vmem:[%s0 + $0x28] sm:$0xff]
  %v23 = vld [vmem:[%s0 + $0x30] sm:$0xff]
  %v24 = vld [vmem:[%s0 + $0x38] sm:$0xff]
  %v25 = vld [vmem:[%s0 + $0x40] sm:$0xff]
  %v26 = vld [vmem:[%s0 + $0x48] sm:$0xff]
  %v27 = vld [vmem:[%s0 + $0x50] sm:$0xff]
  %v28 = vld [vmem:[%s0 + $0x58] sm:$0xff]
  %v29 = vld [vmem:[%s0 + $0x60] sm:$0xff]
  %v30 = vld [vmem:[%s0 + $0x68] sm:$0xff]
  %v31 = vld [vmem:[%s0 + $0x70] sm:$0xff]
  %v32 = vld [vmem:[%s0 + $0x78] sm:$0xff]
  %v33 = vld [vmem:[%s2] sm:$0x1]
  %v35 = vlaneseq
  %v36 = vshrl.u32 %v35, 7
  %v37 = vsub.s32 0, %v36
  %v38 = vrot.slane %v33, %v37
  %v40 = vmul.f32 %v17, %v38
  %v41 = vmul.f32 %v18, %v38
  %v42 = vmul.f32 %v19, %v38
  %v43 = vmul.f32 %v20, %v38
  %v44 = vmul.f32 %v21, %v38
  %v45 = vmul.f32 %v22, %v38
  %v46 = vmul.f32 %v23, %v38
  %v47 = vmul.f32 %v24, %v38
  %v48 = vmul.f32 %v25, %v38
  %v49 = vmul.f32 %v26, %v38
  %v50 = vmul.f32 %v27, %v38
  %v51 = vmul.f32 %v28, %v38
  %v52 = vmul.f32 %v29, %v38
  %v53 = vmul.f32 %v30, %v38
  %v54 = vmul.f32 %v31, %v38
  %v55 = vmul.f32 %v32, %v38
  %v56 = vld [vmem:[%s3] sm:$0x1]
  %v58 = vlaneseq
  %v59 = vshrl.u32 %v58, 7
  %v60 = vsub.s32 0, %v59
  %v61 = vrot.slane %v56, %v60
  %v63 = vadd.f32 %v40, %v61
  %v64 = vadd.f32 %v41, %v61
  %v65 = vadd.f32 %v42, %v61
  %v66 = vadd.f32 %v43, %v61
  %v67 = vadd.f32 %v44, %v61
  %v68 = vadd.f32 %v45, %v61
  %v69 = vadd.f32 %v46, %v61
  %v70 = vadd.f32 %v47, %v61
  %v71 = vadd.f32 %v48, %v61
  %v72 = vadd.f32 %v49, %v61
  %v73 = vadd.f32 %v50, %v61
  %v74 = vadd.f32 %v51, %v61
  %v75 = vadd.f32 %v52, %v61
  %v76 = vadd.f32 %v53, %v61
  %v77 = vadd.f32 %v54, %v61
  %v78 = vadd.f32 %v55, %v61
  %vm79 = vcmp.ge.f32.partialorder %v63, 0.0
  %vm80 = vcmp.ge.f32.partialorder %v64, 0.0
  %vm81 = vcmp.ge.f32.partialorder %v65, 0.0
  %vm82 = vcmp.ge.f32.partialorder %v66, 0.0
  %vm83 = vcmp.ge.f32.partialorder %v67, 0.0
  %vm84 = vcmp.ge.f32.partialorder %v68, 0.0
  %vm85 = vcmp.ge.f32.partialorder %v69, 0.0
  %vm86 = vcmp.ge.f32.partialorder %v70, 0.0
  %vm87 = vcmp.ge.f32.partialorder %v71, 0.0
  %vm88 = vcmp.ge.f32.partialorder %v72, 0.0
  %vm89 = vcmp.ge.f32.partialorder %v73, 0.0
  %vm90 = vcmp.ge.f32.partialorder %v74, 0.0
  %vm91 = vcmp.ge.f32.partialorder %v75, 0.0
  %vm92 = vcmp.ge.f32.partialorder %v76, 0.0
  %vm93 = vcmp.ge.f32.partialorder %v77, 0.0
  %vm94 = vcmp.ge.f32.partialorder %v78, 0.0
  %v95 = vmul.f32 %v63, 0.1
  %v96 = vmul.f32 %v64, 0.1
  %v97 = vmul.f32 %v65, 0.1
  %v98 = vmul.f32 %v66, 0.1
  %v99 = vmul.f32 %v67, 0.1
  %v100 = vmul.f32 %v68, 0.1
  %v101 = vmul.f32 %v69, 0.1
  %v102 = vmul.f32 %v70, 0.1
  %v103 = vmul.f32 %v71, 0.1
  %v104 = vmul.f32 %v72, 0.1
  %v105 = vmul.f32 %v73, 0.1
  %v106 = vmul.f32 %v74, 0.1
  %v107 = vmul.f32 %v75, 0.1
  %v108 = vmul.f32 %v76, 0.1
  %v109 = vmul.f32 %v77, 0.1
  %v110 = vmul.f32 %v78, 0.1
  %v111 = vsel %vm79, %v63, %v95
  %v112 = vsel %vm80, %v64, %v96
  %v113 = vsel %vm81, %v65, %v97
  %v114 = vsel %vm82, %v66, %v98
  %v115 = vsel %vm83, %v67, %v99
  %v116 = vsel %vm84, %v68, %v100
  %v117 = vsel %vm85, %v69, %v101
  %v118 = vsel %vm86, %v70, %v102
  %v119 = vsel %vm87, %v71, %v103
  %v120 = vsel %vm88, %v72, %v104
  %v121 = vsel %vm89, %v73, %v105
  %v122 = vsel %vm90, %v74, %v106
  %v123 = vsel %vm91, %v75, %v107
  %v124 = vsel %vm92, %v76, %v108
  %v125 = vsel %vm93, %v77, %v109
  %v126 = vsel %vm94, %v78, %v110
  %v127 = vld [vmem:[%s1] sm:$0xff]
  %v128 = vld [vmem:[%s1 + $0x8] sm:$0xff]
  %v129 = vld [vmem:[%s1 + $0x10] sm:$0xff]
  %v130 = vld [vmem:[%s1 + $0x18] sm:$0xff]
  %v131 = vld [vmem:[%s1 + $0x20] sm:$0xff]
  %v132 = vld [vmem:[%s1 + $0x28] sm:$0xff]
  %v133 = vld [vmem:[%s1 + $0x30] sm:$0xff]
  %v134 = vld [vmem:[%s1 + $0x38] sm:$0xff]
  %v135 = vld [vmem:[%s1 + $0x40] sm:$0xff]
  %v136 = vld [vmem:[%s1 + $0x48] sm:$0xff]
  %v137 = vld [vmem:[%s1 + $0x50] sm:$0xff]
  %v138 = vld [vmem:[%s1 + $0x58] sm:$0xff]
  %v139 = vld [vmem:[%s1 + $0x60] sm:$0xff]
  %v140 = vld [vmem:[%s1 + $0x68] sm:$0xff]
  %v141 = vld [vmem:[%s1 + $0x70] sm:$0xff]
  %v142 = vld [vmem:[%s1 + $0x78] sm:$0xff]
  %v143 = vadd.f32 %v111, %v127
  %v144 = vadd.f32 %v112, %v128
  %v145 = vadd.f32 %v113, %v129
  %v146 = vadd.f32 %v114, %v130
  %v147 = vadd.f32 %v115, %v131
  %v148 = vadd.f32 %v116, %v132
  %v149 = vadd.f32 %v117, %v133
  %v150 = vadd.f32 %v118, %v134
  %v151 = vadd.f32 %v119, %v135
  %v152 = vadd.f32 %v120, %v136
  %v153 = vadd.f32 %v121, %v137
  %v154 = vadd.f32 %v122, %v138
  %v155 = vadd.f32 %v123, %v139
  %v156 = vadd.f32 %v124, %v140
  %v157 = vadd.f32 %v125, %v141
  %v158 = vadd.f32 %v126, %v142
  %159 = vst [vmem:[%s4] sm:$0xff] %v143
  %160 = vst [vmem:[%s4 + $0x8] sm:$0xff] %v144
  %161 = vst [vmem:[%s4 + $0x10] sm:$0xff] %v145
  %162 = vst [vmem:[%s4 + $0x18] sm:$0xff] %v146
  %163 = vst [vmem:[%s4 + $0x20] sm:$0xff] %v147
  %164 = vst [vmem:[%s4 + $0x28] sm:$0xff] %v148
  %165 = vst [vmem:[%s4 + $0x30] sm:$0xff] %v149
  %166 = vst [vmem:[%s4 + $0x38] sm:$0xff] %v150
  %167 = vst [vmem:[%s4 + $0x40] sm:$0xff] %v151
  %168 = vst [vmem:[%s4 + $0x48] sm:$0xff] %v152
  %169 = vst [vmem:[%s4 + $0x50] sm:$0xff] %v153
  %170 = vst [vmem:[%s4 + $0x58] sm:$0xff] %v154
  %171 = vst [vmem:[%s4 + $0x60] sm:$0xff] %v155
  %172 = vst [vmem:[%s4 + $0x68] sm:$0xff] %v156
  %173 = vst [vmem:[%s4 + $0x70] sm:$0xff] %v157
  %174 = vst [vmem:[%s4 + $0x78] sm:$0xff] %v158
  // Predicated region
  $region18: #{upsample_forward.3} parent=0 // pred_check
    _
  $region19: #{upsample_forward.3} parent=0 // pred_check_branch
    %176 = sbr.rel (0) target = $region21
  $region20: #{upsample_forward.3} parent=0 // pred_region
    _
  $region21: #{upsample_forward.3} parent=0 // pred_fallthru
    _
  // Predicated region
  $region22: #{upsample_forward.3} parent=0 // pred_check
    _
  $region23: #{upsample_forward.3} parent=0 // pred_check_branch
    %178 = sbr.rel (0) target = $region25
  $region24: #{upsample_forward.3} parent=0 // pred_region
    _
  $region25: #{upsample_forward.3} parent=0 // pred_fallthru
    _

</llo_original>
